<compile_context>
chip_gen: v5e
topology: v5e:2x2
jax: 0.10.0
libtpu: 0.0.40
codegen_flags: <defaults>
</compile_context>

<pallas_src>
import functools
import math

import jax
import jax.numpy as jnp
from jax.experimental import pallas as pl
from jax.experimental.pallas import tpu as pltpu

EPS = 1e-5
MOMENTUM = 0.1
_VMEM_LIMIT_BYTES = 32 * 1024 * 1024       # scoped VMEM request (safe on all chips)
_TILE_BUDGET_BYTES = 12 * 1024 * 1024      # double-buffered activation+output per step
_MAX_BATCH_UNROLL = 8                      # bound per-step matmul unrolling


def _round_up(x, m):
    return -(-x // m) * m


def _choose_tiling(n, hw, c_total, c_out, budget_bytes):
    """Pick (bt, thw, hwp): batch block, spatial (lane) block, padded spatial extent.

    Preference order:
      1. keep the whole H*W per step (no pad copy, contiguous HBM DMA) and take as
         many batch elements per step as the VMEM budget / unroll cap allow;
      2. otherwise tile H*W into multiples of 128 that divide the padded extent
         (one explicit zero-pad copy when H*W is not 128-aligned).
    """
    per_lane_bytes = 2 * (c_total + c_out) * 4        # double-buffered in + out, f32
    max_lanes = max(128, budget_bytes // per_lane_bytes)
    if hw <= max_lanes:
        bt = max(1, min(n, max_lanes // hw, _MAX_BATCH_UNROLL))
        while n % bt:                                  # keep the grid exact (no ragged blocks)
            bt -= 1
        return bt, hw, hw
    hwp = _round_up(hw, 128)
    q = hwp // 128
    cap = max(1, min(2048, max_lanes) // 128)
    best = 1
    for d in range(1, q + 1):
        if q % d == 0 and d <= cap:
            best = d
    return 1, best * 128, hwp


# ----------------------------- Pallas kernels ------------------------------ #

def _stats_kernel(*args, n_inputs):
    """Accumulate per-channel sum / sum-of-squares over the (N, H*W) axes.

    args = [x_1 .. x_k, sum_1 .. sum_k, sumsq_1 .. sumsq_k]
    x_i block: (bt, C_i, thw); sum_i / sumsq_i: (C_i, 1) accumulators resident
    across the whole grid (both axes "arbitrary")."""
    x_refs = args[:n_inputs]
    sum_refs = args[n_inputs:2 * n_inputs]
    sumsq_refs = args[2 * n_inputs:3 * n_inputs]

    @pl.when(jnp.logical_and(pl.program_id(0) == 0, pl.program_id(1) == 0))
    def _():
        for i in range(n_inputs):
            sum_refs[i][...] = jnp.zeros_like(sum_refs[i])
            sumsq_refs[i][...] = jnp.zeros_like(sumsq_refs[i])

    for i in range(n_inputs):
        x = x_refs[i][...].astype(jnp.float32)            # (bt, C_i, thw)
        s = jnp.sum(x, axis=0)                            # (C_i, thw) VPU adds
        sq = jnp.sum(x * x, axis=0)
        sum_refs[i][...] += jnp.sum(s, axis=-1, keepdims=True)     # XLU lane reduce
        sumsq_refs[i][...] += jnp.sum(sq, axis=-1, keepdims=True)


def _bn_relu_conv_kernel(*args, n_inputs, mm_dtype):
    """Fused BN (precomputed scale/shift) + ReLU + 1x1-conv on one (bt, thw) tile.

    out[b] = sum_i  W_i @ relu(x_i[b] * scale_i + shift_i)  + bias
    args = [x_1..x_k, scale_1..scale_k, shift_1..shift_k, w_1..w_k, bias, out]."""
    x_refs = args[:n_inputs]
    scale_refs = args[n_inputs:2 * n_inputs]
    shift_refs = args[2 * n_inputs:3 * n_inputs]
    w_refs = args[3 * n_inputs:4 * n_inputs]
    b_ref = args[4 * n_inputs]
    out_ref = args[4 * n_inputs + 1]

    bt = x_refs[0].shape[0]
    ws = [w_refs[i][...].astype(mm_dtype) for i in range(n_inputs)]   # (Cout, C_i)
    bias = b_ref[...]                                                  # (Cout, 1)

    rs = []
    for i in range(n_inputs):
        x = x_refs[i][...].astype(jnp.float32)                         # (bt, C_i, thw)
        bn = x * scale_refs[i][...][None] + shift_refs[i][...][None]   # (C_i,1) bcast
        rs.append(jnp.maximum(bn, 0.0).astype(mm_dtype))

    for b in range(bt):
        acc = None
        for i in range(n_inputs):
            part = jnp.dot(ws[i], rs[i][b], preferred_element_type=jnp.float32)
            acc = part if acc is None else acc + part
        out_ref[b, :, :] = (acc + bias).astype(out_ref.dtype)          # lane-dense


# ------------------------------ host wrapper ------------------------------- #

def efficient_densenet_bottleneck(inputs, norm_weight, norm_bias,
                                  running_mean, running_var,
                                  conv_weight, conv_bias,
                                  *, momentum=MOMENTUM, eps=EPS,
                                  matmul_dtype=jnp.bfloat16,
                                  tile_budget_bytes=_TILE_BUDGET_BYTES):
    """Training-mode forward of EfficientDensenetBottleneck (1x1 conv).

    inputs: NCHW array or list of NCHW arrays (DenseNet features; the channel
    concatenation happens implicitly inside the kernels).
    Returns (output NCHW, new_running_mean, new_running_var)."""
    if not isinstance(inputs, (list, tuple)):
        inputs = [inputs]
    inputs = list(inputs)
    n_in = len(inputs)
    N, _, H, W = inputs[0].shape
    chans = [int(x.shape[1]) for x in inputs]
    C = int(sum(chans))
    offsets, off = [], 0
    for c in chans:
        offsets.append(off)
        off += c
    Cout = int(conv_weight.shape[0])
    assert conv_weight.shape[1] == C and tuple(conv_weight.shape[2:]) == (1, 1)

    HW = H * W
    bt, thw, HWp = _choose_tiling(N, HW, C, Cout, tile_budget_bytes)
    grid = (N // bt, HWp // thw)

    # View each NCHW input as (N, C_i, H*W): free, no data movement.
    xs = [x.reshape(N, c, HW) for x, c in zip(inputs, chans)]
    if HWp != HW:
        # TODO(synk): zero-pad is one extra activation copy; it is only taken when
        # H*W must be spatially tiled and is not a multiple of 128.  Zero lanes do
        # not bias the statistics because m_total uses the true element count.
        xs = [jnp.pad(x, ((0, 0), (0, 0), (0, HWp - HW))) for x in xs]

    m_total = float(N * HW)          # true per-channel count (padding excluded)

    # ---- pass 1: per-channel sum / sum-of-squares (grid reduction) ----------
    stats_outs = pl.pallas_call(
        functools.partial(_stats_kernel, n_inputs=n_in),
        out_shape=tuple(jax.ShapeDtypeStruct((c, 1), jnp.float32)
                        for c in chans + chans),
        grid=grid,
        in_specs=[pl.BlockSpec((bt, c, thw), lambda nb, j: (nb, 0, j))
                  for c in chans],
        out_specs=tuple(pl.BlockSpec((c, 1), lambda nb, j: (0, 0))
                        for c in chans + chans),
        compiler_params=pltpu.CompilerParams(
            dimension_semantics=("arbitrary", "arbitrary"),
            vmem_limit_bytes=_VMEM_LIMIT_BYTES),
        cost_estimate=pl.CostEstimate(
            flops=3 * N * HWp * C, transcendentals=0,
            bytes_accessed=N * HWp * C * 4 + 2 * C * 4),
    )(*xs)
    sums = jnp.concatenate(stats_outs[:n_in], axis=0)[:, 0]        # (C,)
    sumsqs = jnp.concatenate(stats_outs[n_in:], axis=0)[:, 0]      # (C,)

    # Tiny (C,) host-side math: fold BN into a single scale/shift per channel.
    mean = sums / m_total
    # TODO(synk): E[x^2]-E[x]^2 loses precision for very large N*H*W; a chunked
    # Welford / two-pass centered-variance kernel would be more robust.
    var = jnp.maximum(sumsqs / m_total - mean * mean, 0.0)
    inv = jax.lax.rsqrt(var + eps)
    scale = norm_weight.astype(jnp.float32) * inv                  # (C,)
    shift = norm_bias.astype(jnp.float32) - mean * scale           # (C,)

    scales = [scale[o:o + c].reshape(c, 1) for o, c in zip(offsets, chans)]
    shifts = [shift[o:o + c].reshape(c, 1) for o, c in zip(offsets, chans)]
    w2d = conv_weight.reshape(Cout, C).astype(jnp.float32)
    ws = [w2d[:, o:o + c].astype(matmul_dtype) for o, c in zip(offsets, chans)]
    if conv_bias is None:
        b2d = jnp.zeros((Cout, 1), jnp.float32)
    else:
        b2d = conv_bias.reshape(Cout, 1).astype(jnp.float32)

    # ---- pass 2: fused BN + ReLU + 1x1 conv (per-input partial matmuls) -----
    conv_in_specs = (
        [pl.BlockSpec((bt, c, thw), lambda nb, j: (nb, 0, j)) for c in chans]
        + [pl.BlockSpec((c, 1), lambda nb, j: (0, 0)) for c in chans]     # scale
        + [pl.BlockSpec((c, 1), lambda nb, j: (0, 0)) for c in chans]     # shift
        + [pl.BlockSpec((Cout, c), lambda nb, j: (0, 0)) for c in chans]  # weight
        + [pl.BlockSpec((Cout, 1), lambda nb, j: (0, 0))])                # bias

    out3d = pl.pallas_call(
        functools.partial(_bn_relu_conv_kernel, n_inputs=n_in,
                          mm_dtype=matmul_dtype),
        out_shape=jax.ShapeDtypeStruct((N, Cout, HWp), inputs[0].dtype),
        grid=grid,
        in_specs=conv_in_specs,
        out_specs=pl.BlockSpec((bt, Cout, thw), lambda nb, j: (nb, 0, j)),
        compiler_params=pltpu.CompilerParams(
            dimension_semantics=("parallel", "parallel"),
            vmem_limit_bytes=_VMEM_LIMIT_BYTES),
        cost_estimate=pl.CostEstimate(
            flops=2 * N * HWp * C * Cout + 4 * N * HWp * C,
            transcendentals=0,
            bytes_accessed=N * HWp * (C + Cout) * 4),
    )(*xs, *scales, *shifts, *ws, b2d)

    out = out3d[..., :HW].reshape(N, Cout, H, W)

    # Running-stat side effect of training-mode batch_norm (tiny, plain JAX).
    bessel = m_total / max(m_total - 1.0, 1.0)
    var_unbiased = var * bessel
    new_running_mean = (1.0 - momentum) * running_mean + momentum * mean
    new_running_var = (1.0 - momentum) * running_var + momentum * var_unbiased
    return out, new_running_mean, new_running_var


# ------------------------------ reference ---------------------------------- #

def _reference_forward(inputs, norm_weight, norm_bias, running_mean, running_var,
                       conv_weight, conv_bias, momentum=MOMENTUM, eps=EPS,
                       matmul_dtype=jnp.float32):
    """Pure-JAX training-mode concat -> BN -> ReLU -> 1x1 conv reference."""
    x = jnp.concatenate(inputs, axis=1) if len(inputs) > 1 else inputs[0]
    mean = jnp.mean(x, axis=(0, 2, 3))
    var = jnp.mean((x - mean[None, :, None, None]) ** 2, axis=(0, 2, 3))
    xn = (x - mean[None, :, None, None]) * jax.lax.rsqrt(
        var[None, :, None, None] + eps)
    bn = xn * norm_weight[None, :, None, None] + norm_bias[None, :, None, None]
    relu = jnp.maximum(bn, 0.0)
    w2d = conv_weight.reshape(conv_weight.shape[0], -1)
    relu_m = relu.astype(matmul_dtype).astype(jnp.float32)
    w_m = w2d.astype(matmul_dtype).astype(jnp.float32)
    out = jnp.einsum('nchw,oc->nohw', relu_m, w_m)
    if conv_bias is not None:
        out = out + conv_bias[None, :, None, None]
    m = x.shape[0] * x.shape[2] * x.shape[3]
    rm = (1.0 - momentum) * running_mean + momentum * mean
    rv = (1.0 - momentum) * running_var + momentum * var * (m / (m - 1.0))
    return out, rm, rv


# ---------------------------------- main ----------------------------------- #

if __name__ == "__main__":
    # Small DenseNet-like config: two 8-channel feature maps (implicit concat
    # -> 16 input channels), 16 output channels, kernel_size=1.
    N, H, W = 2, 16, 16
    C1, C2 = 8, 8
    C_IN = C1 + C2
    C_OUT = 16

    key = jax.random.PRNGKey(0)
    k1, k2, k3, k4, k5, k6, k7 = jax.random.split(key, 7)

    x1 = jax.random.normal(k1, (N, C1, H, W), dtype=jnp.float32)
    x2 = 0.5 * jax.random.normal(k2, (N, C2, H, W), dtype=jnp.float32) + 0.25

    # Deterministic parameter init mirroring _reset_parameters().
    norm_weight = jax.random.uniform(k3, (C_IN,), dtype=jnp.float32)   # U[0,1)
    norm_bias = jnp.zeros((C_IN,), dtype=jnp.float32)
    running_mean = jnp.zeros((C_IN,), dtype=jnp.float32)
    running_var = jnp.ones((C_IN,), dtype=jnp.float32)
    stdv = 1.0 / math.sqrt(C_IN)
    conv_weight = jax.random.uniform(k4, (C_OUT, C_IN, 1, 1), dtype=jnp.float32,
                                     minval=-stdv, maxval=stdv)
    conv_bias = jax.random.uniform(k5, (C_OUT,), dtype=jnp.float32,
                                   minval=-stdv, maxval=stdv)

    # --- case 1: default path (full H*W lane block, batch-blocked), f32 matmul.
    ref32, exp_rm, exp_rv = _reference_forward(
        [x1, x2], norm_weight, norm_bias, running_mean, running_var,
        conv_weight, conv_bias, matmul_dtype=jnp.float32)
    out32, rm32, rv32 = efficient_densenet_bottleneck(
        [x1, x2], norm_weight, norm_bias, running_mean, running_var,
        conv_weight, conv_bias, matmul_dtype=jnp.float32)
    jax.block_until_ready(out32)
    assert out32.shape == (N, C_OUT, H, W)
    assert jnp.allclose(out32, ref32, atol=1e-4, rtol=1e-4), \
        f"f32 max abs err {jnp.max(jnp.abs(out32 - ref32))}"
    assert jnp.allclose(rm32, exp_rm, atol=1e-5, rtol=1e-5)
    assert jnp.allclose(rv32, exp_rv, atol=1e-5, rtol=1e-5)

    # --- case 2: default bf16 MXU fast path; reference rounds matmul inputs too.
    ref16, _, _ = _reference_forward(
        [x1, x2], norm_weight, norm_bias, running_mean, running_var,
        conv_weight, conv_bias, matmul_dtype=jnp.bfloat16)
    out16, _, _ = efficient_densenet_bottleneck(
        [x1, x2], norm_weight, norm_bias, running_mean, running_var,
        conv_weight, conv_bias)
    jax.block_until_ready(out16)
    assert out16.shape == (N, C_OUT, H, W)
    assert jnp.allclose(out16, ref16, atol=1e-2, rtol=1e-2), \
        f"bf16 max abs err {jnp.max(jnp.abs(out16 - ref16))}"

    # --- case 3: non-128-multiple spatial extent with a tiny tile budget to force
    # the spatial-tiling + zero-pad + multi-tile grid-reduction path.
    Ht, Wt = 20, 20
    x3 = jax.random.normal(k6, (N, C1, Ht, Wt), dtype=jnp.float32)
    x4 = 0.3 * jax.random.normal(k7, (N, C2, Ht, Wt), dtype=jnp.float32) - 0.1
    ref_t, _, _ = _reference_forward(
        [x3, x4], norm_weight, norm_bias, running_mean, running_var,
        conv_weight, conv_bias, matmul_dtype=jnp.float32)
    out_t, _, _ = efficient_densenet_bottleneck(
        [x3, x4], norm_weight, norm_bias, running_mean, running_var,
        conv_weight, conv_bias, matmul_dtype=jnp.float32,
        tile_budget_bytes=64 * 1024)
    jax.block_until_ready(out_t)
    assert out_t.shape == (N, C_OUT, Ht, Wt)
    assert jnp.allclose(out_t, ref_t, atol=1e-4, rtol=1e-4), \
        f"tiled max abs err {jnp.max(jnp.abs(out_t - ref_t))}"

    print("KERNEL_OK")
</pallas_src>

<mosaic_0001>
module attributes {stable_mosaic.version = 11 : i64} {
  func.func @_stats_kernel(%arg0: i32, %arg1: i32, %arg2: memref<2x8x256xf32, #tpu.memory_space<vmem>>, %arg3: memref<2x8x256xf32, #tpu.memory_space<vmem>>, %arg4: memref<8x1xf32, #tpu.memory_space<vmem>>, %arg5: memref<8x1xf32, #tpu.memory_space<vmem>>, %arg6: memref<8x1xf32, #tpu.memory_space<vmem>>, %arg7: memref<8x1xf32, #tpu.memory_space<vmem>>) attributes {dimension_semantics = [#tpu.dimension_semantics<arbitrary>, #tpu.dimension_semantics<arbitrary>], iteration_bounds = array<i64: 1, 1>, scalar_prefetch = 0 : i64, scratch_operands = 0 : i64, tpu.core_type = #tpu.core_type<tc>, window_params = [{transform_indices = @transform_0, window_bounds = array<i64: 2, 8, 256>}, {transform_indices = @transform_1, window_bounds = array<i64: 2, 8, 256>}, {pipeline_mode = #tpu.pipeline_mode<synchronous>, transform_indices = @transform_2, window_bounds = array<i64: 8, 1>}, {pipeline_mode = #tpu.pipeline_mode<synchronous>, transform_indices = @transform_3, window_bounds = array<i64: 8, 1>}, {pipeline_mode = #tpu.pipeline_mode<synchronous>, transform_indices = @transform_4, window_bounds = array<i64: 8, 1>}, {pipeline_mode = #tpu.pipeline_mode<synchronous>, transform_indices = @transform_5, window_bounds = array<i64: 8, 1>}]} {
    %c0_i32 = arith.constant 0 : i32
    %0 = arith.cmpi eq, %arg0, %c0_i32 : i32
    %c0_i32_0 = arith.constant 0 : i32
    %1 = arith.cmpi eq, %arg1, %c0_i32_0 : i32
    %2 = arith.andi %0, %1 : i1
    %3 = arith.extui %2 : i1 to i32
    %c0_i32_1 = arith.constant 0 : i32
    %4 = arith.cmpi ne, %3, %c0_i32_1 : i32
    scf.if %4 {
      %cst_30 = arith.constant 0.000000e+00 : f32
      %33 = vector.broadcast %cst_30 : f32 to vector<8x1xf32>
      %c0_31 = arith.constant 0 : index
      %c0_32 = arith.constant 0 : index
      %34 = vector.load %arg4[%c0_31, %c0_32] : memref<8x1xf32, #tpu.memory_space<vmem>>, vector<8x1xf32>
      tpu.vector_store %arg4[%c0_31, %c0_32], %33 {strides = array<i32>} : memref<8x1xf32, #tpu.memory_space<vmem>>, vector<8x1xf32>,
      %cst_33 = arith.constant 0.000000e+00 : f32
      %35 = vector.broadcast %cst_33 : f32 to vector<8x1xf32>
      %c0_34 = arith.constant 0 : index
      %c0_35 = arith.constant 0 : index
      %36 = vector.load %arg6[%c0_34, %c0_35] : memref<8x1xf32, #tpu.memory_space<vmem>>, vector<8x1xf32>
      tpu.vector_store %arg6[%c0_34, %c0_35], %35 {strides = array<i32>} : memref<8x1xf32, #tpu.memory_space<vmem>>, vector<8x1xf32>,
      %cst_36 = arith.constant 0.000000e+00 : f32
      %37 = vector.broadcast %cst_36 : f32 to vector<8x1xf32>
      %c0_37 = arith.constant 0 : index
      %c0_38 = arith.constant 0 : index
      %38 = vector.load %arg5[%c0_37, %c0_38] : memref<8x1xf32, #tpu.memory_space<vmem>>, vector<8x1xf32>
      tpu.vector_store %arg5[%c0_37, %c0_38], %37 {strides = array<i32>} : memref<8x1xf32, #tpu.memory_space<vmem>>, vector<8x1xf32>,
      %cst_39 = arith.constant 0.000000e+00 : f32
      %39 = vector.broadcast %cst_39 : f32 to vector<8x1xf32>
      %c0_40 = arith.constant 0 : index
      %c0_41 = arith.constant 0 : index
      %40 = vector.load %arg7[%c0_40, %c0_41] : memref<8x1xf32, #tpu.memory_space<vmem>>, vector<8x1xf32>
      tpu.vector_store %arg7[%c0_40, %c0_41], %39 {strides = array<i32>} : memref<8x1xf32, #tpu.memory_space<vmem>>, vector<8x1xf32>,
    } else {
    }
    %c0 = arith.constant 0 : index
    %c0_2 = arith.constant 0 : index
    %c0_3 = arith.constant 0 : index
    %5 = vector.load %arg2[%c0, %c0_2, %c0_3] : memref<2x8x256xf32, #tpu.memory_space<vmem>>, vector<2x8x256xf32>
    %cst = arith.constant dense<0.000000e+00> : vector<8x256xf32>
    %6 = vector.multi_reduction <add>, %5, %cst [0] : vector<2x8x256xf32> to vector<8x256xf32>
    %7 = arith.mulf %5, %5 : vector<2x8x256xf32>
    %cst_4 = arith.constant dense<0.000000e+00> : vector<8x256xf32>
    %8 = vector.multi_reduction <add>, %7, %cst_4 [0] : vector<2x8x256xf32> to vector<8x256xf32>
    %c0_5 = arith.constant 0 : index
    %c0_6 = arith.constant 0 : index
    %9 = vector.load %arg4[%c0_5, %c0_6] : memref<8x1xf32, #tpu.memory_space<vmem>>, vector<8x1xf32>
    %cst_7 = arith.constant dense<0.000000e+00> : vector<8xf32>
    %10 = vector.multi_reduction <add>, %6, %cst_7 [1] : vector<8x256xf32> to vector<8xf32>
    %11 = vector.shape_cast %10 : vector<8xf32> to vector<8x1xf32>
    %12 = arith.addf %9, %11 : vector<8x1xf32>
    %c0_8 = arith.constant 0 : index
    %c0_9 = arith.constant 0 : index
    %13 = vector.load %arg4[%c0_8, %c0_9] : memref<8x1xf32, #tpu.memory_space<vmem>>, vector<8x1xf32>
    tpu.vector_store %arg4[%c0_8, %c0_9], %12 {strides = array<i32>} : memref<8x1xf32, #tpu.memory_space<vmem>>, vector<8x1xf32>,
    %c0_10 = arith.constant 0 : index
    %c0_11 = arith.constant 0 : index
    %14 = vector.load %arg6[%c0_10, %c0_11] : memref<8x1xf32, #tpu.memory_space<vmem>>, vector<8x1xf32>
    %cst_12 = arith.constant dense<0.000000e+00> : vector<8xf32>
    %15 = vector.multi_reduction <add>, %8, %cst_12 [1] : vector<8x256xf32> to vector<8xf32>
    %16 = vector.shape_cast %15 : vector<8xf32> to vector<8x1xf32>
    %17 = arith.addf %14, %16 : vector<8x1xf32>
    %c0_13 = arith.constant 0 : index
    %c0_14 = arith.constant 0 : index
    %18 = vector.load %arg6[%c0_13, %c0_14] : memref<8x1xf32, #tpu.memory_space<vmem>>, vector<8x1xf32>
    tpu.vector_store %arg6[%c0_13, %c0_14], %17 {strides = array<i32>} : memref<8x1xf32, #tpu.memory_space<vmem>>, vector<8x1xf32>,
    %c0_15 = arith.constant 0 : index
    %c0_16 = arith.constant 0 : index
    %c0_17 = arith.constant 0 : index
    %19 = vector.load %arg3[%c0_15, %c0_16, %c0_17] : memref<2x8x256xf32, #tpu.memory_space<vmem>>, vector<2x8x256xf32>
    %cst_18 = arith.constant dense<0.000000e+00> : vector<8x256xf32>
    %20 = vector.multi_reduction <add>, %19, %cst_18 [0] : vector<2x8x256xf32> to vector<8x256xf32>
    %21 = arith.mulf %19, %19 : vector<2x8x256xf32>
    %cst_19 = arith.constant dense<0.000000e+00> : vector<8x256xf32>
    %22 = vector.multi_reduction <add>, %21, %cst_19 [0] : vector<2x8x256xf32> to vector<8x256xf32>
    %c0_20 = arith.constant 0 : index
    %c0_21 = arith.constant 0 : index
    %23 = vector.load %arg5[%c0_20, %c0_21] : memref<8x1xf32, #tpu.memory_space<vmem>>, vector<8x1xf32>
    %cst_22 = arith.constant dense<0.000000e+00> : vector<8xf32>
    %24 = vector.multi_reduction <add>, %20, %cst_22 [1] : vector<8x256xf32> to vector<8xf32>
    %25 = vector.shape_cast %24 : vector<8xf32> to vector<8x1xf32>
    %26 = arith.addf %23, %25 : vector<8x1xf32>
    %c0_23 = arith.constant 0 : index
    %c0_24 = arith.constant 0 : index
    %27 = vector.load %arg5[%c0_23, %c0_24] : memref<8x1xf32, #tpu.memory_space<vmem>>, vector<8x1xf32>
    tpu.vector_store %arg5[%c0_23, %c0_24], %26 {strides = array<i32>} : memref<8x1xf32, #tpu.memory_space<vmem>>, vector<8x1xf32>,
    %c0_25 = arith.constant 0 : index
    %c0_26 = arith.constant 0 : index
    %28 = vector.load %arg7[%c0_25, %c0_26] : memref<8x1xf32, #tpu.memory_space<vmem>>, vector<8x1xf32>
    %cst_27 = arith.constant dense<0.000000e+00> : vector<8xf32>
    %29 = vector.multi_reduction <add>, %22, %cst_27 [1] : vector<8x256xf32> to vector<8xf32>
    %30 = vector.shape_cast %29 : vector<8xf32> to vector<8x1xf32>
    %31 = arith.addf %28, %30 : vector<8x1xf32>
    %c0_28 = arith.constant 0 : index
    %c0_29 = arith.constant 0 : index
    %32 = vector.load %arg7[%c0_28, %c0_29] : memref<8x1xf32, #tpu.memory_space<vmem>>, vector<8x1xf32>
    tpu.vector_store %arg7[%c0_28, %c0_29], %31 {strides = array<i32>} : memref<8x1xf32, #tpu.memory_space<vmem>>, vector<8x1xf32>,
    return
  }
  func.func @transform_0(%arg0: i32, %arg1: i32) -> (i32, i32, i32) {
    %c0_i32 = arith.constant 0 : i32
    %c0_i32_0 = arith.constant 0 : i32
    return %arg0, %c0_i32, %arg1 : i32, i32, i32
  }
  func.func @transform_1(%arg0: i32, %arg1: i32) -> (i32, i32, i32) {
    %c0_i32 = arith.constant 0 : i32
    %c0_i32_0 = arith.constant 0 : i32
    return %arg0, %c0_i32, %arg1 : i32, i32, i32
  }
  func.func @transform_2(%arg0: i32, %arg1: i32) -> (i32, i32) {
    %c0_i32 = arith.constant 0 : i32
    %c0_i32_0 = arith.constant 0 : i32
    %c0_i32_1 = arith.constant 0 : i32
    return %c0_i32, %c0_i32_0 : i32, i32
  }
  func.func @transform_3(%arg0: i32, %arg1: i32) -> (i32, i32) {
    %c0_i32 = arith.constant 0 : i32
    %c0_i32_0 = arith.constant 0 : i32
    %c0_i32_1 = arith.constant 0 : i32
    return %c0_i32, %c0_i32_0 : i32, i32
  }
  func.func @transform_4(%arg0: i32, %arg1: i32) -> (i32, i32) {
    %c0_i32 = arith.constant 0 : i32
    %c0_i32_0 = arith.constant 0 : i32
    %c0_i32_1 = arith.constant 0 : i32
    return %c0_i32, %c0_i32_0 : i32, i32
  }
  func.func @transform_5(%arg0: i32, %arg1: i32) -> (i32, i32) {
    %c0_i32 = arith.constant 0 : i32
    %c0_i32_0 = arith.constant 0 : i32
    %c0_i32_1 = arith.constant 0 : i32
    return %c0_i32, %c0_i32_0 : i32, i32
  }
}

</mosaic_0001>

<llo_original>
// kernel: tpu_custom_call.1
$region0: #{tpu_custom_call.1}
  #allocation0 [shape = 'u32[]', space=smem, size = 0x4, offset = 0x4, fixed_abs, tag = 'smem constant byte address 0x4 - core index']
  #allocation1 [shape = 'u32[72,128]{1,0:T(1,128)}', space=vmem, size = 0x9000, scoped, tag = 'internal scratch']
  %s0 = inlined_call_operand.hbm [shape: f32[2,8,256], index: 0, kind: input, shape index: {}]
  %s1 = inlined_call_operand.hbm [shape: f32[2,8,256], index: 1, kind: input, shape index: {}]
  %s2 = inlined_call_operand.vmem [shape: f32[8,1], index: 2, kind: output, shape index: {0}]
  %s3 = inlined_call_operand.vmem [shape: f32[8,1], index: 3, kind: output, shape index: {1}]
  %s4 = inlined_call_operand.vmem [shape: f32[8,1], index: 4, kind: output, shape index: {2}]
  %s5 = inlined_call_operand.vmem [shape: f32[8,1], index: 5, kind: output, shape index: {3}]
  %6 = xla_tuple %s2, %s3, %s4, %s5
  %s7 = sld [smem:[#allocation0]]
  $region54: #{tpu_custom_call.1} parent=0
    _
  %s9 = ssub.s32 1, %s7
  %s10 = scalar_select 0, %s9, %s7
  $region1: #{tpu_custom_call.1} parent=0
    #allocation2 [shape = 'u8[16384]{0}', space=vmem, size = 0x4000, scoped, tag = 'input window, operand 0, single buffered']
    #allocation3 [shape = 's32[1]{0}', space=sflag, size = 0x4, scoped, tag = 'scoped memory for tpu_custom_call.1']
    #allocation4 [shape = 'u8[16384]{0}', space=vmem, size = 0x4000, scoped, tag = 'input window, operand 1, single buffered']
    #allocation5 [shape = 's32[1]{0}', space=sflag, size = 0x4, scoped, tag = 'scoped memory for tpu_custom_call.1']
    %11 = vsyncpa [#allocation3], 0
    %12 = vsyncpa [#allocation5], 0
    // Predicated region
    $region2: #{tpu_custom_call.1} parent=1 // pred_check
      _
    $region3: #{tpu_custom_call.1} parent=1 // pred_check_branch
      %14 = sbr.rel (0) target = $region5
    $region4: #{tpu_custom_call.1} parent=1 // pred_region
      %16 = vsyncadd [#allocation3], 0
      %s17 = sshll.u32 %s0, 4
      %s18 = int_to_ptr.hbm [resolvable:$true] %s17
      %s19 = sshll.u32 [#allocation2], 4
      %s20 = int_to_ptr.vmem [resolvable:$true] %s19
      %25 = dma.hbm_to_vmem [thread:$0]  %s18, 512, %s20, [#allocation3], 256, 256, 16
    $region5: #{tpu_custom_call.1} parent=1 // pred_fallthru
      _
    // Predicated region
    $region6: #{tpu_custom_call.1} parent=1 // pred_check
      _
    $region7: #{tpu_custom_call.1} parent=1 // pred_check_branch
      %27 = sbr.rel (0) target = $region9
    $region8: #{tpu_custom_call.1} parent=1 // pred_region
      %29 = vsyncadd [#allocation5], 0
      %s30 = sshll.u32 %s1, 4
      %s31 = int_to_ptr.hbm [resolvable:$true] %s30
      %s32 = sshll.u32 [#allocation4], 4
      %s33 = int_to_ptr.vmem [resolvable:$true] %s32
      %38 = dma.hbm_to_vmem [thread:$0]  %s31, 512, %s33, [#allocation5], 256, 256, 16
    $region9: #{tpu_custom_call.1} parent=1 // pred_fallthru
      _
    // Predicated region
    $region10: #{tpu_custom_call.1} parent=1 // pred_check
      _
    $region11: #{tpu_custom_call.1} parent=1 // pred_check_branch
      %40 = sbr.rel (0) target = $region13
    $region12: #{tpu_custom_call.1} parent=1 // pred_region
      %42 = dma.done [#allocation3], 512
    $region13: #{tpu_custom_call.1} parent=1 // pred_fallthru
      _
    // Predicated region
    $region14: #{tpu_custom_call.1} parent=1 // pred_check
      _
    $region15: #{tpu_custom_call.1} parent=1 // pred_check_branch
      %44 = sbr.rel (0) target = $region17
    $region16: #{tpu_custom_call.1} parent=1 // pred_region
      %46 = dma.done [#allocation5], 512
    $region17: #{tpu_custom_call.1} parent=1 // pred_fallthru
      _
    %p47 = scmp.eq.s32.totalorder 0, 0
    %p48 = scmp.eq.s32.totalorder 0, 0
    %p49 = pnand %p47, %p48
    %p50 = pneg %p49
    // Predicated region
    $region18: #{tpu_custom_call.1} parent=1 // pred_check
      _
    $region19: #{tpu_custom_call.1} parent=1 // pred_check_branch
      %52 = sbr.rel (%p49) target = $region21
    $region20: #{tpu_custom_call.1} parent=1 // pred_region
      %vm53 = vcmask 7168
      %54 = vst.msk [vmem:[%s2] sm:$0xff] %vm53, 0.0
      %55 = vst.msk [vmem:[%s4] sm:$0xff] %vm53, 0.0
      %56 = vst.msk [vmem:[%s3] sm:$0xff] %vm53, 0.0
      %57 = vst.msk [vmem:[%s5] sm:$0xff] %vm53, 0.0
    $region21: #{tpu_custom_call.1} parent=1 // pred_fallthru
      _
    %v58 = vld [vmem:[#allocation2] sm:$0xff]
    %v59 = vld [vmem:[#allocation2 + $0x8] sm:$0xff]
    %v60 = vld [vmem:[#allocation2 + $0x10] sm:$0xff]
    %v61 = vld [vmem:[#allocation2 + $0x18] sm:$0xff]
    %v62 = vadd.f32 %v58, %v60
    %v63 = vadd.f32 %v59, %v61
    %v64 = vmul.f32 %v58, %v58
    %v65 = vmul.f32 %v59, %v59
    %v66 = vmul.f32 %v60, %v60
    %v67 = vmul.f32 %v61, %v61
    %v68 = vadd.f32 %v64, %v66
    %v69 = vadd.f32 %v65, %v67
    %v70 = vld [vmem:[%s2] sm:$0xff]
    %v71 = vadd.f32 %v62, %v63
    %72 = vadd.xlane.f32.xlu0 %v71
    %v73 = vpop.xlane.xlu0 %72
    %v74 = vadd.f32 %v70, %v73
    %vm75 = vcmask 7168
    %76 = vst.msk [vmem:[%s2] sm:$0xff] %vm75, %v74
    %v77 = vld [vmem:[%s4] sm:$0xff]
    %v78 = vadd.f32 %v68, %v69
    %79 = vadd.xlane.f32.xlu0 %v78
    %v80 = vpop.xlane.xlu0 %79
    %v81 = vadd.f32 %v77, %v80
    %82 = vst.msk [vmem:[%s4] sm:$0xff] %vm75, %v81
    %v83 = vld [vmem:[#allocation4] sm:$0xff]
    %v84 = vld [vmem:[#allocation4 + $0x8] sm:$0xff]
    %v85 = vld [vmem:[#allocation4 + $0x10] sm:$0xff]
    %v86 = vld [vmem:[#allocation4 + $0x18] sm:$0xff]
    %v87 = vadd.f32 %v83, %v85
    %v88 = vadd.f32 %v84, %v86
    %v89 = vmul.f32 %v83, %v83
    %v90 = vmul.f32 %v84, %v84
    %v91 = vmul.f32 %v85, %v85
    %v92 = vmul.f32 %v86, %v86
    %v93 = vadd.f32 %v89, %v91
    %v94 = vadd.f32 %v90, %v92
    %v95 = vld [vmem:[%s3] sm:$0xff]
    %v96 = vadd.f32 %v87, %v88
    %97 = vadd.xlane.f32.xlu0 %v96
    %v98 = vpop.xlane.xlu0 %97
    %v99 = vadd.f32 %v95, %v98
    %100 = vst.msk [vmem:[%s3] sm:$0xff] %vm75, %v99
    %v101 = vld [vmem:[%s5] sm:$0xff]
    %v102 = vadd.f32 %v93, %v94
    %103 = vadd.xlane.f32.xlu0 %v102
    %v104 = vpop.xlane.xlu0 %103
    %v105 = vadd.f32 %v101, %v104
    %106 = vst.msk [vmem:[%s5] sm:$0xff] %vm75, %v105
    // Predicated region
    $region22: #{tpu_custom_call.1} parent=1 // pred_check
      _
    $region23: #{tpu_custom_call.1} parent=1 // pred_check_branch
      %108 = sbr.rel (0) target = $region25
    $region24: #{tpu_custom_call.1} parent=1 // pred_region
      _
    $region25: #{tpu_custom_call.1} parent=1 // pred_fallthru
      _
    // Predicated region
    $region26: #{tpu_custom_call.1} parent=1 // pred_check
      _
    $region27: #{tpu_custom_call.1} parent=1 // pred_check_branch
      %110 = sbr.rel (0) target = $region29
    $region28: #{tpu_custom_call.1} parent=1 // pred_region
      _
    $region29: #{tpu_custom_call.1} parent=1 // pred_fallthru
      _
    // Predicated region
    $region30: #{tpu_custom_call.1} parent=1 // pred_check
      _
    $region31: #{tpu_custom_call.1} parent=1 // pred_check_branch
      %112 = sbr.rel (0) target = $region33
    $region32: #{tpu_custom_call.1} parent=1 // pred_region
      _
    $region33: #{tpu_custom_call.1} parent=1 // pred_fallthru
      _
    // Predicated region
    $region34: #{tpu_custom_call.1} parent=1 // pred_check
      _
    $region35: #{tpu_custom_call.1} parent=1 // pred_check_branch
      %114 = sbr.rel (0) target = $region37
    $region36: #{tpu_custom_call.1} parent=1 // pred_region
      _
    $region37: #{tpu_custom_call.1} parent=1 // pred_fallthru
      _
    // Predicated region
    $region38: #{tpu_custom_call.1} parent=1 // pred_check
      _
    $region39: #{tpu_custom_call.1} parent=1 // pred_check_branch
      %116 = sbr.rel (0) target = $region41
    $region40: #{tpu_custom_call.1} parent=1 // pred_region
      _
    $region41: #{tpu_custom_call.1} parent=1 // pred_fallthru
      _
    // Predicated region
    $region42: #{tpu_custom_call.1} parent=1 // pred_check
      _
    $region43: #{tpu_custom_call.1} parent=1 // pred_check_branch
      %118 = sbr.rel (0) target = $region45
    $region44: #{tpu_custom_call.1} parent=1 // pred_region
      _
    $region45: #{tpu_custom_call.1} parent=1 // pred_fallthru
      _
    // Predicated region
    $region46: #{tpu_custom_call.1} parent=1 // pred_check
      _
    $region47: #{tpu_custom_call.1} parent=1 // pred_check_branch
      %120 = sbr.rel (0) target = $region49
    $region48: #{tpu_custom_call.1} parent=1 // pred_region
      _
    $region49: #{tpu_custom_call.1} parent=1 // pred_fallthru
      _
    // Predicated region
    $region50: #{tpu_custom_call.1} parent=1 // pred_check
      _
    $region51: #{tpu_custom_call.1} parent=1 // pred_check_branch
      %122 = sbr.rel (0) target = $region53
    $region52: #{tpu_custom_call.1} parent=1 // pred_region
      _
    $region53: #{tpu_custom_call.1} parent=1 // pred_fallthru
      _
    %123 = vsyncpa [#allocation3], 1
    %124 = vsyncpa [#allocation5], 1

</llo_original>
